<compile_context>
chip_gen: v5e
topology: v5e:2x2
jax: 0.10.0
libtpu: 0.0.40
codegen_flags: <defaults>
</compile_context>

<pallas_src>
import functools
import math

import jax
import jax.numpy as jnp
from jax.experimental import pallas as pl
from jax.experimental.pallas import tpu as pltpu


LANE = 128            # lane-dense output width (unmasked stores)
NO_GRID_MAX_B = 4096  # single-shot (no grid) path up to this many batch rows
BATCH_BLOCK = 2048    # batch tile for the gridded huge-batch path


def _qnet_kernel(x_ref, w1_ref, b1_ref, w2_ref, b2_ref, o_ref):
    # h = relu(x @ W1^T + b1)
    h = jnp.dot(x_ref[...], w1_ref[...], preferred_element_type=jnp.float32)
    h = jnp.maximum(h + b1_ref[...], 0.0)
    # out = h @ W2^T + b2   (b2/W2 lane-padded to 128 with zeros)
    out = jnp.dot(h, w2_ref[...], preferred_element_type=jnp.float32)
    o_ref[...] = (out + b2_ref[...]).astype(o_ref.dtype)


def prepare_params(w1, b1, w2, b2, *, out_pad=LANE, dtype=jnp.float32):
    """Pack torch-layout Linear params ONCE (outside the per-call hot path).

    w1: (hid, in), b1: (hid,), w2: (out, hid), b2: (out,)
    Returns ((W1^T, b1_row, W2^T_padded, b2_row_padded), (in, hid, out)).
    """
    hid, in_f = w1.shape
    out_f = w2.shape[0]
    pad = max(out_pad, out_f) - out_f
    w1t = w1.T.astype(dtype)                                        # (in, hid)
    b1r = b1[None, :].astype(dtype)                                 # (1, hid)
    w2t = jnp.pad(w2.T, ((0, 0), (0, pad))).astype(dtype)           # (hid, out_pad)
    b2r = jnp.pad(b2[None, :], ((0, 0), (0, pad))).astype(dtype)    # (1, out_pad)
    return (w1t, b1r, w2t, b2r), (in_f, hid, out_f)


@functools.partial(jax.jit,
                   static_argnames=("dims", "no_grid_max_b", "batch_block"))
def linear_qnet_forward(x, params, dims, *, no_grid_max_b=NO_GRID_MAX_B,
                        batch_block=BATCH_BLOCK):
    """y = relu(x @ W1^T + b1) @ W2^T + b2 with params from prepare_params."""
    in_f, hid, out_f = dims
    w1t, b1r, w2t, b2r = params
    out_pad = w2t.shape[1]
    B = x.shape[0]

    if B <= no_grid_max_b:
        # Single invocation: whole batch + <4 KB of weights live in VMEM,
        # zero grid-step bookkeeping.  Covers per-step inference and the
        # usual replay-buffer minibatch (e.g. B=1024) on every generation.
        out = pl.pallas_call(
            _qnet_kernel,
            out_shape=jax.ShapeDtypeStruct((B, out_pad), x.dtype),
        )(x, w1t, b1r, w2t, b2r)
    else:
        # Huge-batch path: tile the batch so per-tile VMEM is constant
        # regardless of B (avoids the 16/32/64 MiB VMEM cliffs).  Weights
        # stay VMEM-resident (index_map returns (0, 0) every step); tiles
        # are "parallel" so v7x shards them across its 2 TensorCores.
        n_tiles = pl.cdiv(B, batch_block)
        b_padded = n_tiles * batch_block
        if b_padded != B:
            x = jnp.pad(x, ((0, b_padded - B), (0, 0)))
        out = pl.pallas_call(
            _qnet_kernel,
            out_shape=jax.ShapeDtypeStruct((b_padded, out_pad), x.dtype),
            grid=(n_tiles,),
            in_specs=[
                pl.BlockSpec((batch_block, in_f), lambda i: (i, 0)),
                pl.BlockSpec((in_f, hid), lambda i: (0, 0)),
                pl.BlockSpec((1, hid), lambda i: (0, 0)),
                pl.BlockSpec((hid, out_pad), lambda i: (0, 0)),
                pl.BlockSpec((1, out_pad), lambda i: (0, 0)),
            ],
            out_specs=pl.BlockSpec((batch_block, out_pad), lambda i: (i, 0)),
            compiler_params=pltpu.CompilerParams(
                dimension_semantics=("parallel",)),
        )(x, w1t, b1r, w2t, b2r)
        out = out[:B]

    # Lane-padded -> real output width; fused into the same jit executable.
    return out[:, :out_f]


def init_linear_params(key, out_features, in_features, dtype=jnp.float32):
    """Deterministic init mirroring torch.nn.Linear default (uniform +-1/sqrt(fan_in))."""
    k_w, k_b = jax.random.split(key)
    bound = 1.0 / math.sqrt(in_features)
    w = jax.random.uniform(k_w, (out_features, in_features), dtype,
                           minval=-bound, maxval=bound)
    b = jax.random.uniform(k_b, (out_features,), dtype,
                           minval=-bound, maxval=bound)
    return w, b


def _ref_forward(x, w1, b1, w2, b2):
    return jnp.maximum(x @ w1.T + b1, 0.0) @ w2.T + b2


# TODO(synk): Linear_QNet.save() (torch.save of the state_dict) is host-side
# file I/O with no Pallas equivalent; not implemented.


if __name__ == "__main__":
    # Snake Q-net sizes: 11 inputs, 32 hidden, 3 actions.
    input_size, hidden_size, output_size = 11, 32, 3
    batch = 8

    key = jax.random.PRNGKey(0)
    k_x, k_l1, k_l2, k_xm, k_xl = jax.random.split(key, 5)

    w1, b1 = init_linear_params(k_l1, hidden_size, input_size)
    w2, b2 = init_linear_params(k_l2, output_size, hidden_size)

    # Pack once (hoisted out of the per-call hot path).
    params, dims = prepare_params(w1, b1, w2, b2)

    # 1) Small-batch per-step inference (no-grid path).
    x = jax.random.normal(k_x, (batch, input_size), jnp.float32)
    out = jax.block_until_ready(linear_qnet_forward(x, params, dims))
    ref = _ref_forward(x, w1, b1, w2, b2)
    assert out.shape == (batch, output_size)
    assert jnp.allclose(out, ref, atol=1e-5, rtol=1e-5)

    # 2) Replay-buffer training minibatch (still single invocation, no grid).
    xm = jax.random.normal(k_xm, (1024, input_size), jnp.float32)
    outm = jax.block_until_ready(linear_qnet_forward(xm, params, dims))
    refm = _ref_forward(xm, w1, b1, w2, b2)
    assert outm.shape == (1024, output_size)
    assert jnp.allclose(outm, refm, atol=1e-4, rtol=1e-4)

    # 3) Oversized batch exercising the gridded path (padded last tile).
    xl = jax.random.normal(k_xl, (4100, input_size), jnp.float32)
    outl = jax.block_until_ready(linear_qnet_forward(xl, params, dims))
    refl = _ref_forward(xl, w1, b1, w2, b2)
    assert outl.shape == (4100, output_size)
    assert jnp.allclose(outl, refl, atol=1e-4, rtol=1e-4)

    print("KERNEL_OK")
</pallas_src>

<mosaic_0001>
module attributes {stable_mosaic.version = 11 : i64} {
  func.func @_qnet_kernel(%arg0: memref<8x11xf32, #tpu.memory_space<vmem>>, %arg1: memref<11x32xf32, #tpu.memory_space<vmem>>, %arg2: memref<1x32xf32, #tpu.memory_space<vmem>>, %arg3: memref<32x128xf32, #tpu.memory_space<vmem>>, %arg4: memref<1x128xf32, #tpu.memory_space<vmem>>, %arg5: memref<8x128xf32, #tpu.memory_space<vmem>>) attributes {dimension_semantics = [], scalar_prefetch = 0 : i64, scratch_operands = 0 : i64, tpu.core_type = #tpu.core_type<tc>} {
    %c0 = arith.constant 0 : index
    %c0_0 = arith.constant 0 : index
    %0 = vector.load %arg0[%c0, %c0_0] : memref<8x11xf32, #tpu.memory_space<vmem>>, vector<8x11xf32>
    %c0_1 = arith.constant 0 : index
    %c0_2 = arith.constant 0 : index
    %1 = vector.load %arg1[%c0_1, %c0_2] : memref<11x32xf32, #tpu.memory_space<vmem>>, vector<11x32xf32>
    %cst = arith.constant dense<0.000000e+00> : vector<8x32xf32>
    %2 = tpu.matmul %0, %1, %cst {dimension_numbers = #tpu.dot_dimension_numbers<[1], [0], [0], [1], [0, 0, 1, 1], [], []>} : vector<8x11xf32>, vector<11x32xf32>, vector<8x32xf32> -> vector<8x32xf32>
    %c0_3 = arith.constant 0 : index
    %c0_4 = arith.constant 0 : index
    %3 = vector.load %arg2[%c0_3, %c0_4] : memref<1x32xf32, #tpu.memory_space<vmem>>, vector<1x32xf32>
    %4 = vector.broadcast %3 : vector<1x32xf32> to vector<8x32xf32>
    %5 = arith.addf %2, %4 : vector<8x32xf32>
    %cst_5 = arith.constant 0.000000e+00 : f32
    %6 = vector.broadcast %cst_5 : f32 to vector<8x32xf32>
    %7 = arith.maximumf %5, %6 : vector<8x32xf32>
    %c0_6 = arith.constant 0 : index
    %c0_7 = arith.constant 0 : index
    %8 = vector.load %arg3[%c0_6, %c0_7] : memref<32x128xf32, #tpu.memory_space<vmem>>, vector<32x128xf32>
    %cst_8 = arith.constant dense<0.000000e+00> : vector<8x128xf32>
    %9 = tpu.matmul %7, %8, %cst_8 {dimension_numbers = #tpu.dot_dimension_numbers<[1], [0], [0], [1], [0, 0, 1, 1], [], []>} : vector<8x32xf32>, vector<32x128xf32>, vector<8x128xf32> -> vector<8x128xf32>
    %c0_9 = arith.constant 0 : index
    %c0_10 = arith.constant 0 : index
    %10 = vector.load %arg4[%c0_9, %c0_10] : memref<1x128xf32, #tpu.memory_space<vmem>>, vector<1x128xf32>
    %11 = vector.broadcast %10 : vector<1x128xf32> to vector<8x128xf32>
    %12 = arith.addf %9, %11 : vector<8x128xf32>
    %c0_11 = arith.constant 0 : index
    %c0_12 = arith.constant 0 : index
    %13 = vector.load %arg5[%c0_11, %c0_12] : memref<8x128xf32, #tpu.memory_space<vmem>>, vector<8x128xf32>
    tpu.vector_store %arg5[%c0_11, %c0_12], %12 {strides = array<i32>} : memref<8x128xf32, #tpu.memory_space<vmem>>, vector<8x128xf32>,
    return
  }
}

</mosaic_0001>

<llo_original>
// kernel: linear_qnet_forward.1
$region0: #{linear_qnet_forward.1}
  #allocation0 [shape = 'u32[]', space=smem, size = 0x4, offset = 0x4, fixed_abs, tag = 'smem constant byte address 0x4 - core index']
  #allocation1 [shape = 'u32[72,128]{1,0:T(1,128)}', space=vmem, size = 0x9000, scoped, tag = 'internal scratch']
  %s0 = inlined_call_operand.hbm [shape: f32[8,11], index: 0, kind: input, shape index: {}]
  %s1 = inlined_call_operand.hbm [shape: f32[11,32], index: 1, kind: input, shape index: {}]
  %s2 = inlined_call_operand.vmem [shape: f32[1,32], index: 2, kind: input, shape index: {}]
  %s3 = inlined_call_operand.hbm [shape: f32[32,128], index: 3, kind: input, shape index: {}]
  %s4 = inlined_call_operand.vmem [shape: f32[1,128], index: 4, kind: input, shape index: {}]
  %s5 = inlined_call_operand.vmem [shape: f32[8,128], index: 5, kind: output, shape index: {}]
  %s6 = sld [smem:[#allocation0]]
  $region42: #{linear_qnet_forward.1} parent=0
    _
  %s8 = ssub.s32 1, %s6
  %s9 = scalar_select 0, %s8, %s6
  $region1: #{linear_qnet_forward.1} parent=0
    #allocation2 [shape = 'u8[4096]{0}', space=vmem, size = 0x1000, scoped, tag = 'input window, operand 0, single buffered']
    #allocation3 [shape = 's32[1]{0}', space=sflag, size = 0x4, scoped, tag = 'scoped memory for linear_qnet_forward.1']
    #allocation4 [shape = 'u8[8192]{0}', space=vmem, size = 0x2000, scoped, tag = 'input window, operand 1, single buffered']
    #allocation5 [shape = 's32[1]{0}', space=sflag, size = 0x4, scoped, tag = 'scoped memory for linear_qnet_forward.1']
    #allocation6 [shape = 'u8[16384]{0}', space=vmem, size = 0x4000, scoped, tag = 'input window, operand 3, single buffered']
    %10 = vsyncpa [#allocation3], 0
    %11 = vsyncpa [#allocation5], 0
    // Predicated region
    $region2: #{linear_qnet_forward.1} parent=1 // pred_check
      _
    $region3: #{linear_qnet_forward.1} parent=1 // pred_check_branch
      %13 = sbr.rel (0) target = $region5
    $region4: #{linear_qnet_forward.1} parent=1 // pred_region
      %15 = vsyncadd [#allocation3], 0
      %s17 = sshll.u32 %s0, 4
      %s18 = int_to_ptr.hbm [resolvable:$true] %s17
      %s19 = sshll.u32 [#allocation2], 4
      %s20 = int_to_ptr.vmem [resolvable:$true] %s19
      %22 = dma.hbm_to_vmem [thread:$0]  %s18, 128, %s20, [#allocation3]
    $region5: #{linear_qnet_forward.1} parent=1 // pred_fallthru
      _
    // Predicated region
    $region6: #{linear_qnet_forward.1} parent=1 // pred_check
      _
    $region7: #{linear_qnet_forward.1} parent=1 // pred_check_branch
      %24 = sbr.rel (0) target = $region9
    $region8: #{linear_qnet_forward.1} parent=1 // pred_region
      %26 = vsyncadd [#allocation5], 0
      %s27 = sshll.u32 %s1, 4
      %s28 = int_to_ptr.hbm [resolvable:$true] %s27
      %s29 = sshll.u32 [#allocation4], 4
      %s30 = int_to_ptr.vmem [resolvable:$true] %s29
      %35 = dma.hbm_to_vmem [thread:$0]  %s28, 256, %s30, [#allocation5], 128, 128, 8
    $region9: #{linear_qnet_forward.1} parent=1 // pred_fallthru
      _
    // Predicated region
    $region10: #{linear_qnet_forward.1} parent=1 // pred_check
      _
    $region11: #{linear_qnet_forward.1} parent=1 // pred_check_branch
      %37 = sbr.rel (0) target = $region13
    $region12: #{linear_qnet_forward.1} parent=1 // pred_region
      _
    $region13: #{linear_qnet_forward.1} parent=1 // pred_fallthru
      _
    // Predicated region
    $region14: #{linear_qnet_forward.1} parent=1 // pred_check
      _
    $region15: #{linear_qnet_forward.1} parent=1 // pred_check_branch
      %39 = sbr.rel (0) target = $region17
    $region16: #{linear_qnet_forward.1} parent=1 // pred_region
      %41 = vsyncadd [#allocation5], 0
      %s42 = sshll.u32 %s3, 4
      %s43 = int_to_ptr.hbm [resolvable:$true] %s42
      %s44 = sshll.u32 [#allocation6], 4
      %s45 = int_to_ptr.vmem [resolvable:$true] %s44
      %50 = dma.hbm_to_vmem [thread:$0]  %s43, 512, %s45, [#allocation5], 128, 128, 8
    $region17: #{linear_qnet_forward.1} parent=1 // pred_fallthru
      _
    // Predicated region
    $region18: #{linear_qnet_forward.1} parent=1 // pred_check
      _
    $region19: #{linear_qnet_forward.1} parent=1 // pred_check_branch
      %52 = sbr.rel (0) target = $region21
    $region20: #{linear_qnet_forward.1} parent=1 // pred_region
      _
    $region21: #{linear_qnet_forward.1} parent=1 // pred_fallthru
      _
    // Predicated region
    $region22: #{linear_qnet_forward.1} parent=1 // pred_check
      _
    $region23: #{linear_qnet_forward.1} parent=1 // pred_check_branch
      %54 = sbr.rel (0) target = $region25
    $region24: #{linear_qnet_forward.1} parent=1 // pred_region
      %56 = dma.done [#allocation3], 128
    $region25: #{linear_qnet_forward.1} parent=1 // pred_fallthru
      _
    // Predicated region
    $region26: #{linear_qnet_forward.1} parent=1 // pred_check
      _
    $region27: #{linear_qnet_forward.1} parent=1 // pred_check_branch
      %58 = sbr.rel (0) target = $region29
    $region28: #{linear_qnet_forward.1} parent=1 // pred_region
      %60 = dma.done [#allocation5], 256
    $region29: #{linear_qnet_forward.1} parent=1 // pred_fallthru
      _
    // Predicated region
    $region30: #{linear_qnet_forward.1} parent=1 // pred_check
      _
    $region31: #{linear_qnet_forward.1} parent=1 // pred_check_branch
      %62 = sbr.rel (0) target = $region33
    $region32: #{linear_qnet_forward.1} parent=1 // pred_region
      %64 = dma.done [#allocation5], 512
    $region33: #{linear_qnet_forward.1} parent=1 // pred_fallthru
      _
    %v65 = vld [vmem:[#allocation2] sm:$0xff]
    %v66 = vld [vmem:[#allocation4] sm:$0xff]
    %v67 = vld [vmem:[#allocation4 + $0x8] sm:$0x7]
    %v68 = vld [vmem:[%s2] sm:$0x1]
    %v70 = vperm.slane %v68, 0
    %vm72 = vcmask 89088
    %v74 = vsel %vm72, %v65, 0
    %vm76 = vcmask 1042432
    %v78 = vsel %vm76, %v67, 0
    %80 = vmatpush.msra.mxu0 0.0
    %81 = vmatpush.msra.mxu0 0.0
    %82 = vmatpush.msra.mxu0 0.0
    %83 = vmatpush.msra.mxu0 0.0
    %84 = vmatpush.msra.mxu0 0.0
    %85 = vmatpush.msra.mxu0 0.0
    %86 = vmatpush.msra.mxu0 0.0
    %87 = vmatpush.msra.mxu0 0.0
    %88 = vmatpush.msra.mxu0 0.0
    %89 = vmatpush.msra.mxu0 0.0
    %90 = vmatpush.msra.mxu0 0.0
    %91 = vmatpush.msra.mxu0 0.0
    %92 = vmatpush.msra.mxu0 0.0
    %93 = vmatpush.msra.mxu0 0.0
    %94 = vmatpush.msra.mxu0 %v78
    %95 = vmatpush.msra.mxu0 %v66
    %96 = vmatmul.f32.gmra.mxu0 %v74
    %v97 = vpop.f32.mrf.mxu0
    %v98 = vadd.f32 %v70, %v97
    %99 = vdwg.mxu0
    %v100 = vmax.f32 %v98, 0.0
    %v101 = vld [vmem:[#allocation6] sm:$0xff]
    %v102 = vld [vmem:[#allocation6 + $0x8] sm:$0xff]
    %v103 = vld [vmem:[#allocation6 + $0x10] sm:$0xff]
    %v104 = vld [vmem:[#allocation6 + $0x18] sm:$0xff]
    %v105 = vld [vmem:[%s4] sm:$0x1]
    %v107 = vperm.slane %v105, 0
    %vm109 = vcmask 261120
    %v111 = vsel %vm109, %v100, 0
    %113 = vmatpush.msra.mxu0 0.0
    %114 = vmatpush.msra.mxu0 0.0
    %115 = vmatpush.msra.mxu0 0.0
    %116 = vmatpush.msra.mxu0 0.0
    %117 = vmatpush.msra.mxu0 0.0
    %118 = vmatpush.msra.mxu0 0.0
    %119 = vmatpush.msra.mxu0 0.0
    %120 = vmatpush.msra.mxu0 0.0
    %121 = vmatpush.msra.mxu0 0.0
    %122 = vmatpush.msra.mxu0 0.0
    %123 = vmatpush.msra.mxu0 0.0
    %124 = vmatpush.msra.mxu0 0.0
    %125 = vmatpush.msra.mxu0 %v104
    %126 = vmatpush.msra.mxu0 %v103
    %127 = vmatpush.msra.mxu0 %v102
    %128 = vmatpush.msra.mxu0 %v101
    %129 = vmatmul.f32.gmra.mxu0 %v111
    %v130 = vpop.f32.mrf.mxu0
    %v131 = vadd.f32 %v107, %v130
    %132 = vdwg.mxu0
    %133 = vst [vmem:[%s5] sm:$0xff] %v131
    // Predicated region
    $region34: #{linear_qnet_forward.1} parent=1 // pred_check
      _
    $region35: #{linear_qnet_forward.1} parent=1 // pred_check_branch
      %135 = sbr.rel (0) target = $region37
    $region36: #{linear_qnet_forward.1} parent=1 // pred_region
      _
    $region37: #{linear_qnet_forward.1} parent=1 // pred_fallthru
      _
    // Predicated region
    $region38: #{linear_qnet_forward.1} parent=1 // pred_check
      _
    $region39: #{linear_qnet_forward.1} parent=1 // pred_check_branch
      %137 = sbr.rel (0) target = $region41
    $region40: #{linear_qnet_forward.1} parent=1 // pred_region
      _
    $region41: #{linear_qnet_forward.1} parent=1 // pred_fallthru
      _
    %138 = vsyncpa [#allocation3], 1
    %139 = vsyncpa [#allocation5], 1

</llo_original>
